<compile_context>
chip_gen: v6e
topology: v6e:2x2x1
jax: 0.10.0
libtpu: 0.0.40
codegen_flags: <defaults>
</compile_context>

<pallas_src>
import functools
import math

import jax
import jax.numpy as jnp
from jax.experimental import pallas as pl
from jax.experimental.pallas import tpu as pltpu

LANE = 128


def _round_up(x: int, m: int) -> int:
    return ((x + m - 1) // m) * m


def _choose_tile_b(B: int) -> int:
    # Whole batch in one grid step for small/medium B (16-row alignment keeps bf16
    # sublane packing clean); large B uses 512-row tiles (~85% of HBM roofline vs
    # ~63% at 256).  When tiling, prefer an even number of grid steps so v7x
    # megacore's two TensorCores stay balanced; 384/256 are 128-aligned fallbacks.
    if B <= 512:
        return _round_up(max(B, 16), 16)
    for t in (512, 384, 256):
        if (-(-B // t)) % 2 == 0:
            return t
    return 512


def _vmem_cap_bytes() -> int:
    # ~85% of physical VMEM: ~109 MiB on v5e/v6e (128 MiB), ~54 MiB on v7x (64 MiB),
    # leaving Mosaic scratch headroom.  Conservative 64 MiB base if the query fails.
    cap = 64 << 20
    try:
        info = pltpu.get_tpu_info()
        cap = int(getattr(info, "vmem_capacity_bytes", cap))
    except Exception:
        pass
    return max(32 << 20, int(cap * 0.85))


@functools.lru_cache(maxsize=1)
def _single_buffer_supported() -> bool:
    """One-time, lowering-only capability probe for pipeline_mode=pl.Buffered(1)."""
    if not hasattr(pl, "Buffered"):
        return False

    def _probe_kernel(x_ref, o_ref):
        o_ref[...] = x_ref[...]

    try:
        f = pl.pallas_call(
            _probe_kernel,
            out_shape=jax.ShapeDtypeStruct((8, 128), jnp.float32),
            grid=(1,),
            in_specs=[
                pl.BlockSpec((8, 128), lambda i: (0, 0), pipeline_mode=pl.Buffered(1))
            ],
            out_specs=pl.BlockSpec((8, 128), lambda i: (0, 0)),
        )
        jax.jit(f).lower(jax.ShapeDtypeStruct((8, 128), jnp.float32))
        return True
    except Exception:
        return False


def _make_kernel(num_layers: int, bounded: bool, compute_dtype):
    """Kernel closure for fixed num_layers / bounded / compute dtype."""

    def kernel(*refs):
        # refs = (e, r, w1_e, w1_r, b1, [w2, b2, ..., wN, bN],
        #         w0_lo, b0_lo, w0_up, b0_up, out)   if bounded
        #         w0, b0, out                        otherwise
        out_ref = refs[-1]
        in_refs = refs[:-1]
        e_ref, r_ref, w1e_ref, w1r_ref, b1_ref = in_refs[:5]
        rest = in_refs[5:]

        # In-kernel cast (VPU work hidden under DMA/MXU) — inputs arrive in their
        # original dtype so the wrapper never re-writes them to HBM.
        e = e_ref[...].astype(compute_dtype)
        r = r_ref[...].astype(compute_dtype)

        # Layer 1: concat([e, r], -1) @ W1 computed as two accumulating matmuls
        # -> no lane-axis concat inside the kernel.
        x = (
            jnp.dot(e, w1e_ref[...], preferred_element_type=jnp.float32)
            + jnp.dot(r, w1r_ref[...], preferred_element_type=jnp.float32)
            + b1_ref[...]
        )
        x = jnp.maximum(x, 0.0)  # ReLU in f32 (VPU slot, free under MXU)

        # Hidden layers 2..num_layers.
        idx = 0
        for _ in range(num_layers - 1):
            w = rest[idx][...]
            b = rest[idx + 1][...]
            idx += 2
            x = jnp.dot(x.astype(compute_dtype), w, preferred_element_type=jnp.float32) + b
            x = jnp.maximum(x, 0.0)

        xc = x.astype(compute_dtype)
        if bounded:
            # Lower / upper halves from separate matmuls (no slicing of the sigmoid
            # output); a single exact-width fused store removes the wrapper concat.
            w0_lo, b0_lo = rest[idx][...], rest[idx + 1][...]
            w0_up, b0_up = rest[idx + 2][...], rest[idx + 3][...]
            lower = jax.nn.sigmoid(
                jnp.dot(xc, w0_lo, preferred_element_type=jnp.float32) + b0_lo
            )
            upper = jax.nn.sigmoid(
                jnp.dot(xc, w0_up, preferred_element_type=jnp.float32) + b0_up
            )
            upper = lower + upper * (1.0 - lower)
            y = jnp.concatenate([lower, upper], axis=-1)
        else:
            w0, b0 = rest[idx][...], rest[idx + 1][...]
            y = jax.nn.sigmoid(jnp.dot(xc, w0, preferred_element_type=jnp.float32) + b0)
        out_ref[...] = y.astype(out_ref.dtype)

    return kernel


def logic_projection(
    e_embedding,
    r_embedding,
    params,
    *,
    num_layers: int,
    bounded: bool,
    compute_dtype=jnp.bfloat16,
    out_dtype=None,
):
    """Pallas forward. params: w1,b1,...,wN,bN,w0,b0 with w: [in,out], b: [1,out]."""
    assert num_layers >= 1
    B, E = e_embedding.shape
    Br, R = r_embedding.shape
    assert Br == B
    H = params["w1"].shape[1]
    assert params["w1"].shape[0] == E + R
    if bounded:
        assert E % 2 == 0, "bounded requires an even entity_dim"
    half = E // 2
    out_dtype = e_embedding.dtype if out_dtype is None else out_dtype

    H_pad = _round_up(H, LANE)  # lane-dense hidden activations / MXU-friendly N
    tile_b = _choose_tile_b(B)
    B_pad = _round_up(B, tile_b)
    grid = (B_pad // tile_b,)

    # Batch rows padded only when the tile doesn't divide B; feature lanes and dtype of
    # e/r are left untouched (the bf16 cast happens in-kernel).
    e_in = e_embedding if B_pad == B else jnp.pad(e_embedding, ((0, B_pad - B), (0, 0)))
    r_in = r_embedding if B_pad == B else jnp.pad(r_embedding, ((0, B_pad - B), (0, 0)))

    def _prep_w(w, rows, cols):
        return jnp.pad(
            w, ((0, rows - w.shape[0]), (0, cols - w.shape[1]))
        ).astype(compute_dtype)

    def _prep_b(b, cols):
        return jnp.pad(b, ((0, 0), (0, cols - b.shape[1]))).astype(jnp.float32)

    w1, b1 = params["w1"], params["b1"]
    flat = [
        _prep_w(w1[:E], E, H_pad),   # w1_e: (E, H_pad)
        _prep_w(w1[E:], R, H_pad),   # w1_r: (R, H_pad)
        _prep_b(b1, H_pad),
    ]
    for nl in range(2, num_layers + 1):
        flat.append(_prep_w(params[f"w{nl}"], H_pad, H_pad))
        flat.append(_prep_b(params[f"b{nl}"], H_pad))
    w0, b0 = params["w0"], params["b0"]
    if bounded:
        # Split the output layer so lower/upper come out of separate matmuls with
        # exact (unpadded) output widths.
        flat += [
            _prep_w(w0[:, :half], H_pad, half),
            _prep_b(b0[:, :half], half),
            _prep_w(w0[:, half:], H_pad, half),
            _prep_b(b0[:, half:], half),
        ]
    else:
        flat += [_prep_w(w0, H_pad, E), _prep_b(b0, E)]

    # ---- single-buffered weights (constant index maps) if supported ----
    single_buf = _single_buffer_supported()
    weight_mode = pl.Buffered(1) if single_buf else None

    def _const_spec(shape):
        # Default-arg capture of the rank avoids the late-binding closure bug.
        if weight_mode is None:
            return pl.BlockSpec(shape, lambda i, nd=len(shape): (0,) * nd)
        return pl.BlockSpec(
            shape, lambda i, nd=len(shape): (0,) * nd, pipeline_mode=weight_mode
        )

    in_specs = [
        pl.BlockSpec((tile_b, E), lambda i: (i, 0)),
        pl.BlockSpec((tile_b, R), lambda i: (i, 0)),
    ] + [_const_spec(p.shape) for p in flat]

    out_w = E  # exact output width: no lane padding, no wrapper concat/slice pass
    out_shape = jax.ShapeDtypeStruct((B_pad, out_w), out_dtype)
    out_specs = pl.BlockSpec((tile_b, out_w), lambda i: (i, 0))

    # ---- VMEM budget / weight-residency guard / cost estimate ----
    in_itemsize = jnp.dtype(e_embedding.dtype).itemsize
    out_itemsize = jnp.dtype(out_dtype).itemsize
    weight_bytes = sum(int(p.size) * jnp.dtype(p.dtype).itemsize for p in flat)
    resident_weight_bytes = weight_bytes * (1 if single_buf else 2)

    vmem_cap = _vmem_cap_bytes()
    if resident_weight_bytes > int(0.7 * vmem_cap):
        # TODO(synk): fall back to K/N-tiled hidden-layer matmuls (extra grid axis or
        # pltpu.emit_pipeline over H) when the resident weight set no longer fits VMEM
        # (large hidden_dim with several layers on v7x's 64 MiB).
        pass

    act_bytes = 6 * tile_b * max(H_pad, E + R, out_w) * 4   # f32 temporaries headroom
    est = (
        resident_weight_bytes
        + 2 * tile_b * (E + R) * in_itemsize     # double-buffered input tiles
        + 2 * tile_b * out_w * out_itemsize      # double-buffered output tiles
        + act_bytes
        + (4 << 20)
    )
    vmem_limit = int(min(max(est, 32 << 20), vmem_cap))

    flops = 2 * B_pad * (
        (E + R) * H_pad + (num_layers - 1) * H_pad * H_pad + H_pad * out_w
    )
    bytes_accessed = (
        B_pad * (E + R) * in_itemsize + weight_bytes + B_pad * out_w * out_itemsize
    )
    cost = pl.CostEstimate(
        flops=int(flops),
        transcendentals=int(B_pad * out_w),
        bytes_accessed=int(bytes_accessed),
    )

    kernel = _make_kernel(num_layers, bounded, compute_dtype)
    out = pl.pallas_call(
        kernel,
        out_shape=out_shape,
        grid=grid,
        in_specs=in_specs,
        out_specs=out_specs,
        compiler_params=pltpu.CompilerParams(
            dimension_semantics=("parallel",),
            vmem_limit_bytes=vmem_limit,
        ),
        cost_estimate=cost,
    )(e_in, r_in, *flat)

    return out if B_pad == B else out[:B]


def init_params(key, entity_dim, relation_dim, hidden_dim, num_layers):
    """Mirror the PyTorch module's shapes/init. w: [in, out], b: [1, out]."""
    params = {}

    def linear(key, fan_in, fan_out):
        kw, kb = jax.random.split(key)
        bound_w = math.sqrt(6.0 / (fan_in + fan_out))  # xavier_uniform
        w = jax.random.uniform(kw, (fan_in, fan_out), jnp.float32, -bound_w, bound_w)
        bound_b = 1.0 / math.sqrt(fan_in)              # PyTorch default bias init
        b = jax.random.uniform(kb, (1, fan_out), jnp.float32, -bound_b, bound_b)
        return w, b

    keys = jax.random.split(key, num_layers + 1)
    params["w1"], params["b1"] = linear(keys[0], entity_dim + relation_dim, hidden_dim)
    for nl in range(2, num_layers + 1):
        params[f"w{nl}"], params[f"b{nl}"] = linear(keys[nl - 1], hidden_dim, hidden_dim)
    params["w0"], params["b0"] = linear(keys[num_layers], hidden_dim, entity_dim)
    return params


def reference_forward(e, r, params, num_layers, bounded, matmul_dtype=None):
    """Pure-JAX reference. If matmul_dtype is set, casts matmul inputs like the kernel."""

    def c(a):
        return a.astype(matmul_dtype) if matmul_dtype is not None else a

    x = jnp.concatenate([e, r], axis=-1)
    for nl in range(1, num_layers + 1):
        x = jax.nn.relu(
            jnp.dot(c(x), c(params[f"w{nl}"]), preferred_element_type=jnp.float32)
            + params[f"b{nl}"]
        )
    x = jnp.dot(c(x), c(params["w0"]), preferred_element_type=jnp.float32) + params["b0"]
    x = jax.nn.sigmoid(x)
    if bounded:
        half = x.shape[-1] // 2
        lower, upper = x[..., :half], x[..., half:]
        upper = lower + upper * (1.0 - lower)
        x = jnp.concatenate([lower, upper], axis=-1)
    return x


if __name__ == "__main__":
    batch = 16
    entity_dim = 32       # even, so `bounded` chunking is well defined
    relation_dim = 32
    hidden_dim = 64
    num_layers = 2

    key = jax.random.PRNGKey(0)
    k_e, k_r, k_p = jax.random.split(key, 3)
    e_embedding = jax.random.normal(k_e, (batch, entity_dim), jnp.float32)
    r_embedding = jax.random.normal(k_r, (batch, relation_dim), jnp.float32)
    params = init_params(k_p, entity_dim, relation_dim, hidden_dim, num_layers)

    for bounded in (True, False):
        out = logic_projection(
            e_embedding, r_embedding, params, num_layers=num_layers, bounded=bounded
        )
        out = jax.block_until_ready(out)
        assert out.shape == (batch, entity_dim)

        ref_bf16 = reference_forward(
            e_embedding, r_embedding, params, num_layers, bounded, matmul_dtype=jnp.bfloat16
        )
        ref_f32 = reference_forward(e_embedding, r_embedding, params, num_layers, bounded)
        assert jnp.allclose(out, ref_bf16, atol=5e-3, rtol=5e-3), (
            f"mismatch vs bf16-matmul reference (bounded={bounded})"
        )
        assert jnp.allclose(out, ref_f32, atol=5e-2, rtol=5e-2), (
            f"mismatch vs f32 reference (bounded={bounded})"
        )

    print("KERNEL_OK")
</pallas_src>

<mosaic_0001>
module attributes {stable_mosaic.version = 11 : i64} {
  func.func @kernel(%arg0: i32, %arg1: memref<16x32xf32, #tpu.memory_space<vmem>>, %arg2: memref<16x32xf32, #tpu.memory_space<vmem>>, %arg3: memref<32x128xbf16, #tpu.memory_space<vmem>>, %arg4: memref<32x128xbf16, #tpu.memory_space<vmem>>, %arg5: memref<1x128xf32, #tpu.memory_space<vmem>>, %arg6: memref<128x128xbf16, #tpu.memory_space<vmem>>, %arg7: memref<1x128xf32, #tpu.memory_space<vmem>>, %arg8: memref<128x16xbf16, #tpu.memory_space<vmem>>, %arg9: memref<1x16xf32, #tpu.memory_space<vmem>>, %arg10: memref<128x16xbf16, #tpu.memory_space<vmem>>, %arg11: memref<1x16xf32, #tpu.memory_space<vmem>>, %arg12: memref<16x32xf32, #tpu.memory_space<vmem>>) attributes {dimension_semantics = [#tpu.dimension_semantics<parallel>], iteration_bounds = array<i64: 1>, scalar_prefetch = 0 : i64, scratch_operands = 0 : i64, tpu.core_type = #tpu.core_type<tc>, window_params = [{transform_indices = @transform_0, window_bounds = array<i64: 16, 32>}, {transform_indices = @transform_1, window_bounds = array<i64: 16, 32>}, {pipeline_mode = #tpu.pipeline_mode<synchronous>, transform_indices = @transform_2, window_bounds = array<i64: 32, 128>}, {pipeline_mode = #tpu.pipeline_mode<synchronous>, transform_indices = @transform_3, window_bounds = array<i64: 32, 128>}, {pipeline_mode = #tpu.pipeline_mode<synchronous>, transform_indices = @transform_4, window_bounds = array<i64: 1, 128>}, {pipeline_mode = #tpu.pipeline_mode<synchronous>, transform_indices = @transform_5, window_bounds = array<i64: 128, 128>}, {pipeline_mode = #tpu.pipeline_mode<synchronous>, transform_indices = @transform_6, window_bounds = array<i64: 1, 128>}, {pipeline_mode = #tpu.pipeline_mode<synchronous>, transform_indices = @transform_7, window_bounds = array<i64: 128, 16>}, {pipeline_mode = #tpu.pipeline_mode<synchronous>, transform_indices = @transform_8, window_bounds = array<i64: 1, 16>}, {pipeline_mode = #tpu.pipeline_mode<synchronous>, transform_indices = @transform_9, window_bounds = array<i64: 128, 16>}, {pipeline_mode = #tpu.pipeline_mode<synchronous>, transform_indices = @transform_10, window_bounds = array<i64: 1, 16>}, {transform_indices = @transform_11, window_bounds = array<i64: 16, 32>}]} {
    %c0 = arith.constant 0 : index
    %c0_0 = arith.constant 0 : index
    %0 = vector.load %arg1[%c0, %c0_0] : memref<16x32xf32, #tpu.memory_space<vmem>>, vector<16x32xf32>
    %1 = arith.truncf %0 : vector<16x32xf32> to vector<16x32xbf16>
    %c0_1 = arith.constant 0 : index
    %c0_2 = arith.constant 0 : index
    %2 = vector.load %arg2[%c0_1, %c0_2] : memref<16x32xf32, #tpu.memory_space<vmem>>, vector<16x32xf32>
    %3 = arith.truncf %2 : vector<16x32xf32> to vector<16x32xbf16>
    %c0_3 = arith.constant 0 : index
    %c0_4 = arith.constant 0 : index
    %4 = vector.load %arg3[%c0_3, %c0_4] : memref<32x128xbf16, #tpu.memory_space<vmem>>, vector<32x128xbf16>
    %cst = arith.constant dense<0.000000e+00> : vector<16x128xf32>
    %5 = tpu.matmul %1, %4, %cst {dimension_numbers = #tpu.dot_dimension_numbers<[1], [0], [0], [1], [0, 0, 1, 1], [], []>} : vector<16x32xbf16>, vector<32x128xbf16>, vector<16x128xf32> -> vector<16x128xf32>
    %c0_5 = arith.constant 0 : index
    %c0_6 = arith.constant 0 : index
    %6 = vector.load %arg4[%c0_5, %c0_6] : memref<32x128xbf16, #tpu.memory_space<vmem>>, vector<32x128xbf16>
    %cst_7 = arith.constant dense<0.000000e+00> : vector<16x128xf32>
    %7 = tpu.matmul %3, %6, %cst_7 {dimension_numbers = #tpu.dot_dimension_numbers<[1], [0], [0], [1], [0, 0, 1, 1], [], []>} : vector<16x32xbf16>, vector<32x128xbf16>, vector<16x128xf32> -> vector<16x128xf32>
    %8 = arith.addf %5, %7 : vector<16x128xf32>
    %c0_8 = arith.constant 0 : index
    %c0_9 = arith.constant 0 : index
    %9 = vector.load %arg5[%c0_8, %c0_9] : memref<1x128xf32, #tpu.memory_space<vmem>>, vector<1x128xf32>
    %10 = vector.broadcast %9 : vector<1x128xf32> to vector<16x128xf32>
    %11 = arith.addf %8, %10 : vector<16x128xf32>
    %cst_10 = arith.constant 0.000000e+00 : f32
    %12 = vector.broadcast %cst_10 : f32 to vector<16x128xf32>
    %13 = arith.maximumf %11, %12 : vector<16x128xf32>
    %c0_11 = arith.constant 0 : index
    %c0_12 = arith.constant 0 : index
    %14 = vector.load %arg6[%c0_11, %c0_12] : memref<128x128xbf16, #tpu.memory_space<vmem>>, vector<128x128xbf16>
    %c0_13 = arith.constant 0 : index
    %c0_14 = arith.constant 0 : index
    %15 = vector.load %arg7[%c0_13, %c0_14] : memref<1x128xf32, #tpu.memory_space<vmem>>, vector<1x128xf32>
    %16 = arith.truncf %13 : vector<16x128xf32> to vector<16x128xbf16>
    %cst_15 = arith.constant dense<0.000000e+00> : vector<16x128xf32>
    %17 = tpu.matmul %16, %14, %cst_15 {dimension_numbers = #tpu.dot_dimension_numbers<[1], [0], [0], [1], [0, 0, 1, 1], [], []>} : vector<16x128xbf16>, vector<128x128xbf16>, vector<16x128xf32> -> vector<16x128xf32>
    %18 = vector.broadcast %15 : vector<1x128xf32> to vector<16x128xf32>
    %19 = arith.addf %17, %18 : vector<16x128xf32>
    %cst_16 = arith.constant 0.000000e+00 : f32
    %20 = vector.broadcast %cst_16 : f32 to vector<16x128xf32>
    %21 = arith.maximumf %19, %20 : vector<16x128xf32>
    %22 = arith.truncf %21 : vector<16x128xf32> to vector<16x128xbf16>
    %c0_17 = arith.constant 0 : index
    %c0_18 = arith.constant 0 : index
    %23 = vector.load %arg8[%c0_17, %c0_18] : memref<128x16xbf16, #tpu.memory_space<vmem>>, vector<128x16xbf16>
    %c0_19 = arith.constant 0 : index
    %c0_20 = arith.constant 0 : index
    %24 = vector.load %arg9[%c0_19, %c0_20] : memref<1x16xf32, #tpu.memory_space<vmem>>, vector<1x16xf32>
    %c0_21 = arith.constant 0 : index
    %c0_22 = arith.constant 0 : index
    %25 = vector.load %arg10[%c0_21, %c0_22] : memref<128x16xbf16, #tpu.memory_space<vmem>>, vector<128x16xbf16>
    %c0_23 = arith.constant 0 : index
    %c0_24 = arith.constant 0 : index
    %26 = vector.load %arg11[%c0_23, %c0_24] : memref<1x16xf32, #tpu.memory_space<vmem>>, vector<1x16xf32>
    %cst_25 = arith.constant dense<0.000000e+00> : vector<16x16xf32>
    %27 = tpu.matmul %22, %23, %cst_25 {dimension_numbers = #tpu.dot_dimension_numbers<[1], [0], [0], [1], [0, 0, 1, 1], [], []>} : vector<16x128xbf16>, vector<128x16xbf16>, vector<16x16xf32> -> vector<16x16xf32>
    %28 = vector.broadcast %24 : vector<1x16xf32> to vector<16x16xf32>
    %29 = arith.addf %27, %28 : vector<16x16xf32>
    %30 = arith.negf %29 : vector<16x16xf32>
    %31 = math.exp %30 : vector<16x16xf32>
    %cst_26 = arith.constant 1.000000e+00 : f32
    %32 = vector.broadcast %cst_26 : f32 to vector<16x16xf32>
    %33 = arith.addf %32, %31 : vector<16x16xf32>
    %34 = arith.divf %32, %33 : vector<16x16xf32>
    %cst_27 = arith.constant dense<0.000000e+00> : vector<16x16xf32>
    %35 = tpu.matmul %22, %25, %cst_27 {dimension_numbers = #tpu.dot_dimension_numbers<[1], [0], [0], [1], [0, 0, 1, 1], [], []>} : vector<16x128xbf16>, vector<128x16xbf16>, vector<16x16xf32> -> vector<16x16xf32>
    %36 = vector.broadcast %26 : vector<1x16xf32> to vector<16x16xf32>
    %37 = arith.addf %35, %36 : vector<16x16xf32>
    %38 = arith.negf %37 : vector<16x16xf32>
    %39 = math.exp %38 : vector<16x16xf32>
    %cst_28 = arith.constant 1.000000e+00 : f32
    %40 = vector.broadcast %cst_28 : f32 to vector<16x16xf32>
    %41 = arith.addf %40, %39 : vector<16x16xf32>
    %42 = arith.divf %40, %41 : vector<16x16xf32>
    %cst_29 = arith.constant 1.000000e+00 : f32
    %43 = vector.broadcast %cst_29 : f32 to vector<16x16xf32>
    %44 = arith.subf %43, %34 : vector<16x16xf32>
    %45 = arith.mulf %42, %44 : vector<16x16xf32>
    %46 = arith.addf %34, %45 : vector<16x16xf32>
    %47 = tpu.concatenate %34, %46 in 1 : vector<16x16xf32>, vector<16x16xf32> -> vector<16x32xf32>
    %c0_30 = arith.constant 0 : index
    %c0_31 = arith.constant 0 : index
    %48 = vector.load %arg12[%c0_30, %c0_31] : memref<16x32xf32, #tpu.memory_space<vmem>>, vector<16x32xf32>
    tpu.vector_store %arg12[%c0_30, %c0_31], %47 {strides = array<i32>} : memref<16x32xf32, #tpu.memory_space<vmem>>, vector<16x32xf32>,
    return
  }
  func.func @transform_0(%arg0: i32) -> (i32, i32) {
    %c0_i32 = arith.constant 0 : i32
    %c0_i32_0 = arith.constant 0 : i32
    return %arg0, %c0_i32 : i32, i32
  }
  func.func @transform_1(%arg0: i32) -> (i32, i32) {
    %c0_i32 = arith.constant 0 : i32
    %c0_i32_0 = arith.constant 0 : i32
    return %arg0, %c0_i32 : i32, i32
  }
  func.func @transform_2(%arg0: i32) -> (i32, i32) {
    %c0_i32 = arith.constant 0 : i32
    %c0_i32_0 = arith.constant 0 : i32
    %c0_i32_1 = arith.constant 0 : i32
    return %c0_i32, %c0_i32_0 : i32, i32
  }
  func.func @transform_3(%arg0: i32) -> (i32, i32) {
    %c0_i32 = arith.constant 0 : i32
    %c0_i32_0 = arith.constant 0 : i32
    %c0_i32_1 = arith.constant 0 : i32
    return %c0_i32, %c0_i32_0 : i32, i32
  }
  func.func @transform_4(%arg0: i32) -> (i32, i32) {
    %c0_i32 = arith.constant 0 : i32
    %c0_i32_0 = arith.constant 0 : i32
    %c0_i32_1 = arith.constant 0 : i32
    return %c0_i32, %c0_i32_0 : i32, i32
  }
  func.func @transform_5(%arg0: i32) -> (i32, i32) {
    %c0_i32 = arith.constant 0 : i32
    %c0_i32_0 = arith.constant 0 : i32
    %c0_i32_1 = arith.constant 0 : i32
    return %c0_i32, %c0_i32_0 : i32, i32
  }
  func.func @transform_6(%arg0: i32) -> (i32, i32) {
    %c0_i32 = arith.constant 0 : i32
    %c0_i32_0 = arith.constant 0 : i32
    %c0_i32_1 = arith.constant 0 : i32
    return %c0_i32, %c0_i32_0 : i32, i32
  }
  func.func @transform_7(%arg0: i32) -> (i32, i32) {
    %c0_i32 = arith.constant 0 : i32
    %c0_i32_0 = arith.constant 0 : i32
    %c0_i32_1 = arith.constant 0 : i32
    return %c0_i32, %c0_i32_0 : i32, i32
  }
  func.func @transform_8(%arg0: i32) -> (i32, i32) {
    %c0_i32 = arith.constant 0 : i32
    %c0_i32_0 = arith.constant 0 : i32
    %c0_i32_1 = arith.constant 0 : i32
    return %c0_i32, %c0_i32_0 : i32, i32
  }
  func.func @transform_9(%arg0: i32) -> (i32, i32) {
    %c0_i32 = arith.constant 0 : i32
    %c0_i32_0 = arith.constant 0 : i32
    %c0_i32_1 = arith.constant 0 : i32
    return %c0_i32, %c0_i32_0 : i32, i32
  }
  func.func @transform_10(%arg0: i32) -> (i32, i32) {
    %c0_i32 = arith.constant 0 : i32
    %c0_i32_0 = arith.constant 0 : i32
    %c0_i32_1 = arith.constant 0 : i32
    return %c0_i32, %c0_i32_0 : i32, i32
  }
  func.func @transform_11(%arg0: i32) -> (i32, i32) {
    %c0_i32 = arith.constant 0 : i32
    %c0_i32_0 = arith.constant 0 : i32
    return %arg0, %c0_i32 : i32, i32
  }
}

</mosaic_0001>

<llo_original>
// kernel: tpu_custom_call.1
$region0: #{tpu_custom_call.1}
  #allocation0 [shape = 'u32[]', space=smem, size = 0x4, offset = 0x4, fixed_abs, tag = 'smem constant byte address 0x4 - core index']
  #allocation1 [shape = 'u32[144,128]{1,0:T(1,128)}', space=vmem, size = 0x12000, scoped, tag = 'internal scratch']
  %s0 = inlined_call_operand.vmem [shape: f32[16,32], index: 0, kind: input, shape index: {}]
  %s1 = inlined_call_operand.vmem [shape: f32[16,32], index: 1, kind: input, shape index: {}]
  %s2 = inlined_call_operand.vmem [shape: bf16[32,128], index: 2, kind: input, shape index: {}]
  %s3 = inlined_call_operand.vmem [shape: bf16[32,128], index: 3, kind: input, shape index: {}]
  %s4 = inlined_call_operand.vmem [shape: f32[1,128], index: 4, kind: input, shape index: {}]
  %s5 = inlined_call_operand.vmem [shape: bf16[128,128], index: 5, kind: input, shape index: {}]
  %s6 = inlined_call_operand.vmem [shape: f32[1,128], index: 6, kind: input, shape index: {}]
  %s7 = inlined_call_operand.vmem [shape: bf16[128,16], index: 7, kind: input, shape index: {}]
  %s8 = inlined_call_operand.vmem [shape: f32[1,16], index: 8, kind: input, shape index: {}]
  %s9 = inlined_call_operand.vmem [shape: bf16[128,16], index: 9, kind: input, shape index: {}]
  %s10 = inlined_call_operand.vmem [shape: f32[1,16], index: 10, kind: input, shape index: {}]
  %s11 = inlined_call_operand.hbm [shape: f32[16,32], index: 11, kind: output, shape index: {}]
  %s12 = sld [smem:[#allocation0]]
  $region54: #{tpu_custom_call.1} parent=0
    _
  %s14 = ssub.s32 1, %s12
  %s15 = scalar_select 0, %s14, %s12
  $region1: #{tpu_custom_call.1} parent=0
    #allocation2 [shape = 'u8[8192]{0}', space=vmem, size = 0x2000, scoped, tag = 'output window, operand 0, single buffered']
    #allocation3 [shape = 's32[1]{0}', space=sflag, size = 0x4, scoped, tag = 'scoped memory for tpu_custom_call.1']
    %16 = vsyncpa [#allocation3], 0
    // Predicated region
    $region2: #{tpu_custom_call.1} parent=1 // pred_check
      _
    $region3: #{tpu_custom_call.1} parent=1 // pred_check_branch
      %18 = sbr.rel (0) target = $region5
    $region4: #{tpu_custom_call.1} parent=1 // pred_region
      _
    $region5: #{tpu_custom_call.1} parent=1 // pred_fallthru
      _
    // Predicated region
    $region6: #{tpu_custom_call.1} parent=1 // pred_check
      _
    $region7: #{tpu_custom_call.1} parent=1 // pred_check_branch
      %20 = sbr.rel (0) target = $region9
    $region8: #{tpu_custom_call.1} parent=1 // pred_region
      _
    $region9: #{tpu_custom_call.1} parent=1 // pred_fallthru
      _
    // Predicated region
    $region10: #{tpu_custom_call.1} parent=1 // pred_check
      _
    $region11: #{tpu_custom_call.1} parent=1 // pred_check_branch
      %22 = sbr.rel (0) target = $region13
    $region12: #{tpu_custom_call.1} parent=1 // pred_region
      _
    $region13: #{tpu_custom_call.1} parent=1 // pred_fallthru
      _
    // Predicated region
    $region14: #{tpu_custom_call.1} parent=1 // pred_check
      _
    $region15: #{tpu_custom_call.1} parent=1 // pred_check_branch
      %24 = sbr.rel (0) target = $region17
    $region16: #{tpu_custom_call.1} parent=1 // pred_region
      _
    $region17: #{tpu_custom_call.1} parent=1 // pred_fallthru
      _
    // Predicated region
    $region18: #{tpu_custom_call.1} parent=1 // pred_check
      _
    $region19: #{tpu_custom_call.1} parent=1 // pred_check_branch
      %26 = sbr.rel (0) target = $region21
    $region20: #{tpu_custom_call.1} parent=1 // pred_region
      _
    $region21: #{tpu_custom_call.1} parent=1 // pred_fallthru
      _
    // Predicated region
    $region22: #{tpu_custom_call.1} parent=1 // pred_check
      _
    $region23: #{tpu_custom_call.1} parent=1 // pred_check_branch
      %28 = sbr.rel (0) target = $region25
    $region24: #{tpu_custom_call.1} parent=1 // pred_region
      _
    $region25: #{tpu_custom_call.1} parent=1 // pred_fallthru
      _
    // Predicated region
    $region26: #{tpu_custom_call.1} parent=1 // pred_check
      _
    $region27: #{tpu_custom_call.1} parent=1 // pred_check_branch
      %30 = sbr.rel (0) target = $region29
    $region28: #{tpu_custom_call.1} parent=1 // pred_region
      _
    $region29: #{tpu_custom_call.1} parent=1 // pred_fallthru
      _
    // Predicated region
    $region30: #{tpu_custom_call.1} parent=1 // pred_check
      _
    $region31: #{tpu_custom_call.1} parent=1 // pred_check_branch
      %32 = sbr.rel (0) target = $region33
    $region32: #{tpu_custom_call.1} parent=1 // pred_region
      _
    $region33: #{tpu_custom_call.1} parent=1 // pred_fallthru
      _
    // Predicated region
    $region34: #{tpu_custom_call.1} parent=1 // pred_check
      _
    $region35: #{tpu_custom_call.1} parent=1 // pred_check_branch
      %34 = sbr.rel (0) target = $region37
    $region36: #{tpu_custom_call.1} parent=1 // pred_region
      _
    $region37: #{tpu_custom_call.1} parent=1 // pred_fallthru
      _
    // Predicated region
    $region38: #{tpu_custom_call.1} parent=1 // pred_check
      _
    $region39: #{tpu_custom_call.1} parent=1 // pred_check_branch
      %36 = sbr.rel (0) target = $region41
    $region40: #{tpu_custom_call.1} parent=1 // pred_region
      _
    $region41: #{tpu_custom_call.1} parent=1 // pred_fallthru
      _
    // Predicated region
    $region42: #{tpu_custom_call.1} parent=1 // pred_check
      _
    $region43: #{tpu_custom_call.1} parent=1 // pred_check_branch
      %38 = sbr.rel (0) target = $region45
    $region44: #{tpu_custom_call.1} parent=1 // pred_region
      _
    $region45: #{tpu_custom_call.1} parent=1 // pred_fallthru
      _
    %v40 = vld [vmem:[%s0] sm:$0xff]
    %v41 = vld [vmem:[%s0 + $0x8] sm:$0xff]
    %v42 = vpack.c.bf16 %v41, %v40
    %v43 = vld [vmem:[%s1] sm:$0xff]
    %v44 = vld [vmem:[%s1 + $0x8] sm:$0xff]
    %v45 = vpack.c.bf16 %v44, %v43
    %v46 = vld [vmem:[%s2] sm:$0xf]
    %v47 = vld [vmem:[%s2 + $0x4] sm:$0xf]
    %v48 = vld [vmem:[%s2 + $0x8] sm:$0xf]
    %v49 = vld [vmem:[%s2 + $0xc] sm:$0xf]
    %v50 = vld [vmem:[%s3] sm:$0xf]
    %v51 = vld [vmem:[%s3 + $0x4] sm:$0xf]
    %v52 = vld [vmem:[%s3 + $0x8] sm:$0xf]
    %v53 = vld [vmem:[%s3 + $0xc] sm:$0xf]
    %v58 = vunpack.c.l.b16 %v50
    %v59 = vunpack.c.l.b16 %v51
    %v60 = vunpack.c.l.b16 %v52
    %v61 = vunpack.c.l.b16 %v53
    %v62 = vpack.c.b16 %v59, %v58
    %v63 = vpack.c.b16 %v61, %v60
    %vm66 = vcmask 261120
    %v68 = vsel %vm66, %v45, 0
    %70 = vmatprep.subr.bf16.mxu0 0
    %71 = vmatpush1.bf16.msra.mxu0 0
    %72 = vmatprep.subr.bf16.mxu0 0
    %73 = vmatpush1.bf16.msra.mxu0 0
    %74 = vmatprep.subr.bf16.mxu0 0
    %75 = vmatpush1.bf16.msra.mxu0 0
    %76 = vmatprep.subr.bf16.mxu0 0
    %77 = vmatpush1.bf16.msra.mxu0 0
    %78 = vmatprep.subr.bf16.mxu0 0
    %79 = vmatpush1.bf16.msra.mxu0 0
    %80 = vmatprep.subr.bf16.mxu0 0
    %81 = vmatpush1.bf16.msra.mxu0 0
    %82 = vmatprep.subr.bf16.mxu0 0
    %83 = vmatpush1.bf16.msra.mxu0 %v63
    %84 = vmatprep.subr.bf16.mxu0 0
    %85 = vmatpush1.bf16.msra.mxu0 %v62
    %86 = vmatprep.subr.bf16.mxu0 0
    %87 = vmatpush2.bf16.msra.mxu0 0
    %88 = vmatprep.subr.bf16.mxu0 0
    %89 = vmatpush2.bf16.msra.mxu0 0
    %90 = vmatprep.subr.bf16.mxu0 0
    %91 = vmatpush2.bf16.msra.mxu0 0
    %92 = vmatprep.subr.bf16.mxu0 0
    %93 = vmatpush2.bf16.msra.mxu0 0
    %94 = vmatprep.subr.bf16.mxu0 0
    %95 = vmatpush2.bf16.msra.mxu0 0
    %96 = vmatprep.subr.bf16.mxu0 0
    %97 = vmatpush2.bf16.msra.mxu0 0
    %98 = vmatprep.subr.bf16.mxu0 0
    %99 = vmatpush2.bf16.msra.mxu0 0
    %100 = vmatprep.subr.bf16.mxu0 0
    %101 = vmatpush2.bf16.msra.mxu0 0
    %102 = vmatprep.mubr.bf16.mxu0 0
    %103 = vmatmul.mubr.bf16.gmra.mxu0 %v68
    %v104 = vpop.f32.mrf.mxu0
    %v105 = vadd.f32 0.0, %v104
    %v106 = vpop.f32.mrf.mxu0
    %v107 = vpop.f32.mrf.mxu0
    %v108 = vadd.f32 0.0, %v107
    %v109 = vpop.f32.mrf.mxu0
    %110 = vdwg.mxu0
    %v115 = vunpack.c.l.b16 %v46
    %v116 = vunpack.c.l.b16 %v47
    %v117 = vunpack.c.l.b16 %v48
    %v118 = vunpack.c.l.b16 %v49
    %v119 = vpack.c.b16 %v116, %v115
    %v120 = vpack.c.b16 %v118, %v117
    %v124 = vsel %vm66, %v42, 0
    %126 = vmatprep.subr.bf16.mxu0 0
    %127 = vmatpush1.bf16.msra.mxu0 0
    %128 = vmatprep.subr.bf16.mxu0 0
    %129 = vmatpush1.bf16.msra.mxu0 0
    %130 = vmatprep.subr.bf16.mxu0 0
    %131 = vmatpush1.bf16.msra.mxu0 0
    %132 = vmatprep.subr.bf16.mxu0 0
    %133 = vmatpush1.bf16.msra.mxu0 0
    %134 = vmatprep.subr.bf16.mxu0 0
    %135 = vmatpush1.bf16.msra.mxu0 0
    %136 = vmatprep.subr.bf16.mxu0 0
    %137 = vmatpush1.bf16.msra.mxu0 0
    %138 = vmatprep.subr.bf16.mxu0 0
    %139 = vmatpush1.bf16.msra.mxu0 %v120
    %140 = vmatprep.subr.bf16.mxu0 0
    %141 = vmatpush1.bf16.msra.mxu0 %v119
    %142 = vmatprep.subr.bf16.mxu0 0
    %143 = vmatpush2.bf16.msra.mxu0 0
    %144 = vmatprep.subr.bf16.mxu0 0
    %145 = vmatpush2.bf16.msra.mxu0 0
    %146 = vmatprep.subr.bf16.mxu0 0
    %147 = vmatpush2.bf16.msra.mxu0 0
    %148 = vmatprep.subr.bf16.mxu0 0
    %149 = vmatpush2.bf16.msra.mxu0 0
    %150 = vmatprep.subr.bf16.mxu0 0
    %151 = vmatpush2.bf16.msra.mxu0 0
    %152 = vmatprep.subr.bf16.mxu0 0
    %153 = vmatpush2.bf16.msra.mxu0 0
    %154 = vmatprep.subr.bf16.mxu0 0
    %155 = vmatpush2.bf16.msra.mxu0 0
    %156 = vmatprep.subr.bf16.mxu0 0
    %157 = vmatpush2.bf16.msra.mxu0 0
    %158 = vmatprep.mubr.bf16.mxu0 0
    %159 = vmatmul.mubr.bf16.gmra.mxu0 %v124
    %v160 = vpop.f32.mrf.mxu0
    %v161 = vadd.f32 %v105, %v160
    %v162 = vpop.f32.mrf.mxu0
    %v163 = vpop.f32.mrf.mxu0
    %v164 = vadd.f32 %v108, %v163
    %v165 = vpop.f32.mrf.mxu0
    %166 = vdwg.mxu0
    %v167 = vld [vmem:[%s4] sm:$0x1]
    %v169 = vlaneseq
    %v170 = vshrl.u32 %v169, 7
    %v171 = vsub.s32 0, %v170
    %v172 = vrot.slane %v167, %v171
    %v174 = vadd.f32 %v161, %v172
    %v175 = vadd.f32 %v164, %v172
    %v176 = vmax.f32 %v174, 0.0
    %v177 = vmax.f32 %v175, 0.0
    %v178 = vld [vmem:[%s5] sm:$0xf]
    %v179 = vld [vmem:[%s5 + $0x4] sm:$0xf]
    %v180 = vld [vmem:[%s5 + $0x8] sm:$0xf]
    %v181 = vld [vmem:[%s5 + $0xc] sm:$0xf]
    %v182 = vld [vmem:[%s5 + $0x10] sm:$0xf]
    %v183 = vld [vmem:[%s5 + $0x14] sm:$0xf]
    %v184 = vld [vmem:[%s5 + $0x18] sm:$0xf]
    %v185 = vld [vmem:[%s5 + $0x1c] sm:$0xf]
    %v186 = vld [vmem:[%s5 + $0x20] sm:$0xf]
    %v187 = vld [vmem:[%s5 + $0x24] sm:$0xf]
    %v188 = vld [vmem:[%s5 + $0x28] sm:$0xf]
    %v189 = vld [vmem:[%s5 + $0x2c] sm:$0xf]
    %v190 = vld [vmem:[%s5 + $0x30] sm:$0xf]
    %v191 = vld [vmem:[%s5 + $0x34] sm:$0xf]
    %v192 = vld [vmem:[%s5 + $0x38] sm:$0xf]
    %v193 = vld [vmem:[%s5 + $0x3c] sm:$0xf]
    %v194 = vld [vmem:[%s6] sm:$0x1]
    %v195 = vpack.c.bf16 %v177, %v176
    %v197 = vlaneseq
    %v198 = vshrl.u32 %v197, 7
    %v199 = vsub.s32 0, %v198
    %v200 = vrot.slane %v194, %v199
    %v218 = vunpack.c.l.b16 %v178
    %v219 = vunpack.c.l.b16 %v179
    %v220 = vunpack.c.l.b16 %v180
    %v221 = vunpack.c.l.b16 %v181
    %v222 = vunpack.c.l.b16 %v182
    %v223 = vunpack.c.l.b16 %v183
    %v224 = vunpack.c.l.b16 %v184
    %v225 = vunpack.c.l.b16 %v185
    %v226 = vunpack.c.l.b16 %v186
    %v227 = vunpack.c.l.b16 %v187
    %v228 = vunpack.c.l.b16 %v188
    %v229 = vunpack.c.l.b16 %v189
    %v230 = vunpack.c.l.b16 %v190
    %v231 = vunpack.c.l.b16 %v191
    %v232 = vunpack.c.l.b16 %v192
    %v233 = vunpack.c.l.b16 %v193
    %v234 = vpack.c.b16 %v219, %v218
    %v235 = vpack.c.b16 %v221, %v220
    %v236 = vpack.c.b16 %v223, %v222
    %v237 = vpack.c.b16 %v225, %v224
    %v238 = vpack.c.b16 %v227, %v226
    %v239 = vpack.c.b16 %v229, %v228
    %v240 = vpack.c.b16 %v231, %v230
    %v241 = vpack.c.b16 %v233, %v232
    %250 = vmatprep.subr.bf16.mxu0 0
    %251 = vmatpush1.bf16.msra.mxu0 %v241
    %252 = vmatprep.subr.bf16.mxu0 0
    %253 = vmatpush1.bf16.msra.mxu0 %v240
    %254 = vmatprep.subr.bf16.mxu0 0
    %255 = vmatpush1.bf16.msra.mxu0 %v239
    %256 = vmatprep.subr.bf16.mxu0 0
    %257 = vmatpush1.bf16.msra.mxu0 %v238
    %258 = vmatprep.subr.bf16.mxu0 0
    %259 = vmatpush1.bf16.msra.mxu0 %v237
    %260 = vmatprep.subr.bf16.mxu0 0
    %261 = vmatpush1.bf16.msra.mxu0 %v236
    %262 = vmatprep.subr.bf16.mxu0 0
    %263 = vmatpush1.bf16.msra.mxu0 %v235
    %264 = vmatprep.subr.bf16.mxu0 0
    %265 = vmatpush1.bf16.msra.mxu0 %v234
    %266 = vmatprep.subr.bf16.mxu0 0
    %267 = vmatpush2.bf16.msra.mxu0 0
    %268 = vmatprep.subr.bf16.mxu0 0
    %269 = vmatpush2.bf16.msra.mxu0 0
    %270 = vmatprep.subr.bf16.mxu0 0
    %271 = vmatpush2.bf16.msra.mxu0 0
    %272 = vmatprep.subr.bf16.mxu0 0
    %273 = vmatpush2.bf16.msra.mxu0 0
    %274 = vmatprep.subr.bf16.mxu0 0
    %275 = vmatpush2.bf16.msra.mxu0 0
    %276 = vmatprep.subr.bf16.mxu0 0
    %277 = vmatpush2.bf16.msra.mxu0 0
    %278 = vmatprep.subr.bf16.mxu0 0
    %279 = vmatpush2.bf16.msra.mxu0 0
    %280 = vmatprep.subr.bf16.mxu0 0
    %281 = vmatpush2.bf16.msra.mxu0 0
    %282 = vmatprep.mubr.bf16.mxu0 0
    %283 = vmatmul.mubr.bf16.gmra.mxu0 %v195
    %v284 = vpop.f32.mrf.mxu0
    %v285 = vadd.f32 %v200, %v284
    %v286 = vpop.f32.mrf.mxu0
    %v287 = vpop.f32.mrf.mxu0
    %v288 = vadd.f32 %v200, %v287
    %v289 = vpop.f32.mrf.mxu0
    %290 = vdwg.mxu0
    %v291 = vmax.f32 %v285, 0.0
    %v292 = vmax.f32 %v288, 0.0
    %v293 = vpack.c.bf16 %v292, %v291
    %v294 = vld [vmem:[%s7] sm:$0xf]
    %v295 = vld [vmem:[%s7 + $0x4] sm:$0xf]
    %v296 = vld [vmem:[%s7 + $0x8] sm:$0xf]
    %v297 = vld [vmem:[%s7 + $0xc] sm:$0xf]
    %v298 = vld [vmem:[%s7 + $0x10] sm:$0xf]
    %v299 = vld [vmem:[%s7 + $0x14] sm:$0xf]
    %v300 = vld [vmem:[%s7 + $0x18] sm:$0xf]
    %v301 = vld [vmem:[%s7 + $0x1c] sm:$0xf]
    %v302 = vld [vmem:[%s7 + $0x20] sm:$0xf]
    %v303 = vld [vmem:[%s7 + $0x24] sm:$0xf]
    %v304 = vld [vmem:[%s7 + $0x28] sm:$0xf]
    %v305 = vld [vmem:[%s7 + $0x2c] sm:$0xf]
    %v306 = vld [vmem:[%s7 + $0x30] sm:$0xf]
    %v307 = vld [vmem:[%s7 + $0x34] sm:$0xf]
    %v308 = vld [vmem:[%s7 + $0x38] sm:$0xf]
    %v309 = vld [vmem:[%s7 + $0x3c] sm:$0xf]
    %v310 = vld [vmem:[%s8] sm:$0x1]
    %v311 = vld [vmem:[%s9] sm:$0xf]
    %v312 = vld [vmem:[%s9 + $0x4] sm:$0xf]
    %v313 = vld [vmem:[%s9 + $0x8] sm:$0xf]
    %v314 = vld [vmem:[%s9 + $0xc] sm:$0xf]
    %v315 = vld [vmem:[%s9 + $0x10] sm:$0xf]
    %v316 = vld [vmem:[%s9 + $0x14] sm:$0xf]
    %v317 = vld [vmem:[%s9 + $0x18] sm:$0xf]
    %v318 = vld [vmem:[%s9 + $0x1c] sm:$0xf]
    %v319 = vld [vmem:[%s9 + $0x20] sm:$0xf]
    %v320 = vld [vmem:[%s9 + $0x24] sm:$0xf]
    %v321 = vld [vmem:[%s9 + $0x28] sm:$0xf]
    %v322 = vld [vmem:[%s9 + $0x2c] sm:$0xf]
    %v323 = vld [vmem:[%s9 + $0x30] sm:$0xf]
    %v324 = vld [vmem:[%s9 + $0x34] sm:$0xf]
    %v325 = vld [vmem:[%s9 + $0x38] sm:$0xf]
    %v326 = vld [vmem:[%s9 + $0x3c] sm:$0xf]
    %v327 = vld [vmem:[%s10] sm:$0x1]
    %v329 = vlaneseq
    %v330 = vshrl.u32 %v329, 7
    %v331 = vsub.s32 0, %v330
    %v332 = vrot.slane %v310, %v331
    %v350 = vunpack.c.l.b16 %v294
    %v351 = vunpack.c.l.b16 %v295
    %v352 = vunpack.c.l.b16 %v296
    %v353 = vunpack.c.l.b16 %v297
    %v354 = vunpack.c.l.b16 %v298
    %v355 = vunpack.c.l.b16 %v299
    %v356 = vunpack.c.l.b16 %v300
    %v357 = vunpack.c.l.b16 %v301
    %v358 = vunpack.c.l.b16 %v302
    %v359 = vunpack.c.l.b16 %v303
    %v360 = vunpack.c.l.b16 %v304
    %v361 = vunpack.c.l.b16 %v305
    %v362 = vunpack.c.l.b16 %v306
    %v363 = vunpack.c.l.b16 %v307
    %v364 = vunpack.c.l.b16 %v308
    %v365 = vunpack.c.l.b16 %v309
    %v366 = vpack.c.b16 %v351, %v350
    %v367 = vpack.c.b16 %v353, %v352
    %v368 = vpack.c.b16 %v355, %v354
    %v369 = vpack.c.b16 %v357, %v356
    %v370 = vpack.c.b16 %v359, %v358
    %v371 = vpack.c.b16 %v361, %v360
    %v372 = vpack.c.b16 %v363, %v362
    %v373 = vpack.c.b16 %v365, %v364
    %382 = vmatprep.subr.bf16.mxu0 0
    %383 = vmatpush1.bf16.msra.mxu0 %v373
    %384 = vmatprep.subr.bf16.mxu0 0
    %385 = vmatpush1.bf16.msra.mxu0 %v372
    %386 = vmatprep.subr.bf16.mxu0 0
    %387 = vmatpush1.bf16.msra.mxu0 %v371
    %388 = vmatprep.subr.bf16.mxu0 0
    %389 = vmatpush1.bf16.msra.mxu0 %v370
    %390 = vmatprep.subr.bf16.mxu0 0
    %391 = vmatpush1.bf16.msra.mxu0 %v369
    %392 = vmatprep.subr.bf16.mxu0 0
    %393 = vmatpush1.bf16.msra.mxu0 %v368
    %394 = vmatprep.subr.bf16.mxu0 0
    %395 = vmatpush1.bf16.msra.mxu0 %v367
    %396 = vmatprep.subr.bf16.mxu0 0
    %397 = vmatpush1.bf16.msra.mxu0 %v366
    %398 = vmatprep.subr.bf16.mxu0 0
    %399 = vmatpush2.bf16.msra.mxu0 0
    %400 = vmatprep.subr.bf16.mxu0 0
    %401 = vmatpush2.bf16.msra.mxu0 0
    %402 = vmatprep.subr.bf16.mxu0 0
    %403 = vmatpush2.bf16.msra.mxu0 0
    %404 = vmatprep.subr.bf16.mxu0 0
    %405 = vmatpush2.bf16.msra.mxu0 0
    %406 = vmatprep.subr.bf16.mxu0 0
    %407 = vmatpush2.bf16.msra.mxu0 0
    %408 = vmatprep.subr.bf16.mxu0 0
    %409 = vmatpush2.bf16.msra.mxu0 0
    %410 = vmatprep.subr.bf16.mxu0 0
    %411 = vmatpush2.bf16.msra.mxu0 0
    %412 = vmatprep.subr.bf16.mxu0 0
    %413 = vmatpush2.bf16.msra.mxu0 0
    %414 = vmatprep.mubr.bf16.mxu0 0
    %415 = vmatmul.mubr.bf16.gmra.mxu0 %v293
    %v416 = vpop.f32.mrf.mxu0
    %v417 = vadd.f32 %v332, %v416
    %v418 = vpop.f32.mrf.mxu0
    %v419 = vpop.f32.mrf.mxu0
    %v420 = vadd.f32 %v332, %v419
    %v421 = vpop.f32.mrf.mxu0
    %422 = vdwg.mxu0
    %v423 = vxor.u32 %v417, 2147483648
    %v424 = vxor.u32 %v420, 2147483648
    %v425 = vmul.f32 %v423, 1.442695
    %v426 = vpow.pop %v425
    %v427 = vmul.f32 %v424, 1.442695
    %v428 = vpow.pop %v427
    %v429 = vadd.f32 %v426, 1.0
    %v430 = vadd.f32 %v428, 1.0
    %v431 = vrcp.pop %v429
    %v432 = vmul.f32 1.0, %v431
    %v433 = vrcp.pop %v430
    %v434 = vmul.f32 1.0, %v433
    %v436 = vlaneseq
    %v437 = vshrl.u32 %v436, 7
    %v438 = vsub.s32 0, %v437
    %v439 = vrot.slane %v327, %v438
    %v457 = vunpack.c.l.b16 %v311
    %v458 = vunpack.c.l.b16 %v312
    %v459 = vunpack.c.l.b16 %v313
    %v460 = vunpack.c.l.b16 %v314
    %v461 = vunpack.c.l.b16 %v315
    %v462 = vunpack.c.l.b16 %v316
    %v463 = vunpack.c.l.b16 %v317
    %v464 = vunpack.c.l.b16 %v318
    %v465 = vunpack.c.l.b16 %v319
    %v466 = vunpack.c.l.b16 %v320
    %v467 = vunpack.c.l.b16 %v321
    %v468 = vunpack.c.l.b16 %v322
    %v469 = vunpack.c.l.b16 %v323
    %v470 = vunpack.c.l.b16 %v324
    %v471 = vunpack.c.l.b16 %v325
    %v472 = vunpack.c.l.b16 %v326
    %v473 = vpack.c.b16 %v458, %v457
    %v474 = vpack.c.b16 %v460, %v459
    %v475 = vpack.c.b16 %v462, %v461
    %v476 = vpack.c.b16 %v464, %v463
    %v477 = vpack.c.b16 %v466, %v465
    %v478 = vpack.c.b16 %v468, %v467
    %v479 = vpack.c.b16 %v470, %v469
    %v480 = vpack.c.b16 %v472, %v471
    %489 = vmatprep.subr.bf16.mxu0 0
    %490 = vmatpush1.bf16.msra.mxu0 %v480
    %491 = vmatprep.subr.bf16.mxu0 0
    %492 = vmatpush1.bf16.msra.mxu0 %v479
    %493 = vmatprep.subr.bf16.mxu0 0
    %494 = vmatpush1.bf16.msra.mxu0 %v478
    %495 = vmatprep.subr.bf16.mxu0 0
    %496 = vmatpush1.bf16.msra.mxu0 %v477
    %497 = vmatprep.subr.bf16.mxu0 0
    %498 = vmatpush1.bf16.msra.mxu0 %v476
    %499 = vmatprep.subr.bf16.mxu0 0
    %500 = vmatpush1.bf16.msra.mxu0 %v475
    %501 = vmatprep.subr.bf16.mxu0 0
    %502 = vmatpush1.bf16.msra.mxu0 %v474
    %503 = vmatprep.subr.bf16.mxu0 0
    %504 = vmatpush1.bf16.msra.mxu0 %v473
    %505 = vmatprep.subr.bf16.mxu0 0
    %506 = vmatpush2.bf16.msra.mxu0 0
    %507 = vmatprep.subr.bf16.mxu0 0
    %508 = vmatpush2.bf16.msra.mxu0 0
    %509 = vmatprep.subr.bf16.mxu0 0
    %510 = vmatpush2.bf16.msra.mxu0 0
    %511 = vmatprep.subr.bf16.mxu0 0
    %512 = vmatpush2.bf16.msra.mxu0 0
    %513 = vmatprep.subr.bf16.mxu0 0
    %514 = vmatpush2.bf16.msra.mxu0 0
    %515 = vmatprep.subr.bf16.mxu0 0
    %516 = vmatpush2.bf16.msra.mxu0 0
    %517 = vmatprep.subr.bf16.mxu0 0
    %518 = vmatpush2.bf16.msra.mxu0 0
    %519 = vmatprep.subr.bf16.mxu0 0
    %520 = vmatpush2.bf16.msra.mxu0 0
    %521 = vmatprep.mubr.bf16.mxu0 0
    %522 = vmatmul.mubr.bf16.gmra.mxu0 %v293
    %v523 = vpop.f32.mrf.mxu0
    %v524 = vadd.f32 %v439, %v523
    %v525 = vpop.f32.mrf.mxu0
    %v526 = vpop.f32.mrf.mxu0
    %v527 = vadd.f32 %v439, %v526
    %v528 = vpop.f32.mrf.mxu0
    %529 = vdwg.mxu0
    %v530 = vxor.u32 %v524, 2147483648
    %v531 = vxor.u32 %v527, 2147483648
    %v532 = vmul.f32 %v530, 1.442695
    %v533 = vpow.pop %v532
    %v534 = vmul.f32 %v531, 1.442695
    %v535 = vpow.pop %v534
    %v536 = vadd.f32 %v533, 1.0
    %v537 = vadd.f32 %v535, 1.0
    %v538 = vrcp.pop %v536
    %v539 = vmul.f32 1.0, %v538
    %v540 = vrcp.pop %v537
    %v541 = vmul.f32 1.0, %v540
    %v542 = vsub.f32 1.0, %v432
    %v543 = vsub.f32 1.0, %v434
    %v544 = vmul.f32 %v539, %v542
    %v545 = vmul.f32 %v541, %v543
    %v546 = vadd.f32 %v432, %v544
    %v547 = vadd.f32 %v434, %v545
    %550 = vrot.lane.b32.xlu0 %v546, 16
    %v551 = vpop.permute.xlu0 %550
    %552 = vrot.lane.b32.xlu0 %v547, 16
    %v553 = vpop.permute.xlu0 %552
    %vm556 = vcmask 130048
    %v557 = vsel %vm556, %v432, %v551
    %v558 = vsel %vm556, %v434, %v553
    %559 = vst.msk [vmem:[#allocation2] sm:$0xff] %vm66, %v557
    %560 = vst.msk [vmem:[#allocation2 + $0x8] sm:$0xff] %vm66, %v558
    // Predicated region
    $region46: #{tpu_custom_call.1} parent=1 // pred_check
      _
    $region47: #{tpu_custom_call.1} parent=1 // pred_check_branch
      %562 = sbr.rel (0) target = $region49
    $region48: #{tpu_custom_call.1} parent=1 // pred_region
      %s564 = ssub.s32 256, 256
      %565 = vsyncadd [#allocation3], %s564
      %s566 = sshll.u32 [#allocation2], 4
      %s567 = int_to_ptr.vmem [resolvable:$true] %s566
      %572 = dma.vmem_to_hbm [thread:$0]  %s567, 256, %s11, [#allocation3], 128, 128, 8
    $region49: #{tpu_custom_call.1} parent=1 // pred_fallthru
      _
    // Predicated region
    $region50: #{tpu_custom_call.1} parent=1 // pred_check
      _
    $region51: #{tpu_custom_call.1} parent=1 // pred_check_branch
      %574 = sbr.rel (0) target = $region53
    $region52: #{tpu_custom_call.1} parent=1 // pred_region
      %575 = dma.done [#allocation3], 256
    $region53: #{tpu_custom_call.1} parent=1 // pred_fallthru
      _
    %576 = vsyncpa [#allocation3], 1

</llo_original>
